<compile_context>
chip_gen: v7x
topology: tpu7x:2x2x1
jax: 0.10.0
libtpu: 0.0.40
codegen_flags: <defaults>
</compile_context>

<pallas_src>
import jax
import jax.numpy as jnp
import numpy as np
from jax.experimental import pallas as pl
from jax.experimental.pallas import tpu as pltpu

BN_EPS = 1e-5


def _round_up(n, m):
    return ((n + m - 1) // m) * m


def residual_block_kernel(x_ref, w_ref, p_ref, o_ref):
    out_p = o_ref.shape[-1]                 # static, multiple of 128 -> lane-aligned slices
    x = x_ref[...]                          # (TB, In_p) bf16
    # Two MXU matmuls with f32 accumulation (avoids one big (TB, 2*Out_p) f32 slab).
    h = jnp.dot(x, w_ref[:, :out_p], preferred_element_type=jnp.float32)   # fc path
    a = jnp.dot(x, w_ref[:, out_p:], preferred_element_type=jnp.float32)   # adapter path

    b_fc = p_ref[0:1, :]                    # packed per-feature vectors (rows of one block)
    scale = p_ref[1:2, :]
    shift = p_ref[2:3, :]                   # beta - mean*scale + b_ad

    h = jnp.maximum(h + b_fc, 0.0)          # fc bias + ReLU (bias cannot fold past the ReLU)
    # Folded BatchNorm (eval) + adapter bias + residual add; Dropout(0.3) is identity in eval.
    o_ref[...] = (h * scale + shift + a).astype(o_ref.dtype)


def prepare_residual_block_params(w_fc, b_fc, w_ad, b_ad, gamma, beta,
                                  running_mean, running_var):
    """One-time weight preparation (hoisted out of the per-call path).

    w_fc / w_ad: (In, Out) f32, pre-transposed vs. PyTorch. Vectors: (Out,).
    """
    In, Out = w_fc.shape
    In_p, Out_p = _round_up(In, 128), _round_up(Out, 128)

    # Fold BatchNorm (eval mode) into per-feature scale/shift; fold adapter bias into shift.
    scale = gamma * jax.lax.rsqrt(running_var + BN_EPS)
    shift = beta - running_mean * scale + b_ad

    # Fused, zero-padded, bf16 weight slab: [:, :Out_p] = fc, [:, Out_p:] = adapter.
    w_fused = jnp.zeros((In_p, 2 * Out_p), jnp.bfloat16)
    w_fused = w_fused.at[:In, :Out].set(w_fc.astype(jnp.bfloat16))
    w_fused = w_fused.at[:In, Out_p:Out_p + Out].set(w_ad.astype(jnp.bfloat16))

    # Pack the three per-feature f32 vectors into one sublane-aligned (8, Out_p) block.
    pvec = jnp.zeros((8, Out_p), jnp.float32)
    pvec = pvec.at[0, :Out].set(b_fc).at[1, :Out].set(scale).at[2, :Out].set(shift)

    return {"w_fused": w_fused, "pvec": pvec,
            "In": In, "Out": Out, "In_p": In_p, "Out_p": Out_p}


def _vmem_limit_bytes(TB, In_p, Out_p, out_bytes, resident_buffers):
    resident = (In_p * 2 * Out_p * 2 + 8 * Out_p * 4) * resident_buffers
    streamed = 2 * TB * In_p * 2 + 2 * TB * Out_p * out_bytes      # double-buffered x / out
    work = 2 * TB * Out_p * 4 * 2                                  # f32 matmul results + temps
    need = resident + streamed + work
    try:
        # ≈48 MiB on v7x (64 MiB physical), ≈96 MiB on v5e/v6e (128 MiB physical).
        cap = int(pltpu.get_tpu_info().vmem_capacity_bytes) * 3 // 4
    except Exception:
        cap = 48 * 1024 * 1024                                     # safe on every generation
    return max(16 * 1024 * 1024, min(2 * need + (4 << 20), cap))


def _pallas_apply(xp, w_fused, pvec, TB, In_p, Out_p, out_dtype, single_buffer_residents):
    Bp = xp.shape[0]
    grid = (Bp // TB,)
    out_bytes = np.dtype(out_dtype).itemsize

    if single_buffer_residents:
        # Resident operands never re-DMA; one buffer halves their VMEM footprint (v7x: 64 MiB).
        res_kwargs = {"pipeline_mode": pl.Buffered(1)}
    else:
        res_kwargs = {}

    cost = pl.CostEstimate(
        flops=2 * Bp * In_p * (2 * Out_p),
        transcendentals=0,
        bytes_accessed=xp.size * 2 + w_fused.size * 2 + pvec.size * 4 + Bp * Out_p * out_bytes,
    )

    return pl.pallas_call(
        residual_block_kernel,
        out_shape=jax.ShapeDtypeStruct((Bp, Out_p), out_dtype),
        grid_spec=pltpu.PrefetchScalarGridSpec(
            num_scalar_prefetch=0,
            grid=grid,
            in_specs=[
                pl.BlockSpec((TB, In_p), lambda i: (i, 0)),                       # x, streamed
                pl.BlockSpec((In_p, 2 * Out_p), lambda i: (0, 0), **res_kwargs),  # fused weights
                pl.BlockSpec((8, Out_p), lambda i: (0, 0), **res_kwargs),         # b_fc/scale/shift
            ],
            out_specs=pl.BlockSpec((TB, Out_p), lambda i: (i, 0)),
        ),
        compiler_params=pltpu.CompilerParams(
            dimension_semantics=("parallel",),     # independent batch tiles -> megacore on v7x
            vmem_limit_bytes=_vmem_limit_bytes(TB, In_p, Out_p, out_bytes,
                                               1 if single_buffer_residents else 2),
        ),
        cost_estimate=cost,
    )(xp, w_fused, pvec)


def residual_block_apply(params, x, *, block_b=512, out_dtype=jnp.float32):
    """x: (B, In) float. Returns (B, Out) in out_dtype (pass bf16 to halve output traffic)."""
    B = x.shape[0]
    In, Out = params["In"], params["Out"]
    In_p, Out_p = params["In_p"], params["Out_p"]

    # Batch tile: as large as block_b allows, but keep >=2 grid steps whenever B > 8 so the
    # "parallel" batch axis can actually shard across v7x's two TensorCores.
    tb_full = _round_up(B, 8)
    TB = min(block_b, tb_full)
    if TB == tb_full and B > 8:
        TB = _round_up(-(-B // 2), 8)
    Bp = _round_up(B, TB)

    # Pad + cast x directly into bf16 in one fused op (no intermediate padded f32 copy).
    xp = jnp.zeros((Bp, In_p), jnp.bfloat16).at[:B, :In].set(x.astype(jnp.bfloat16))

    try:
        out_padded = jax.block_until_ready(
            _pallas_apply(xp, params["w_fused"], params["pvec"], TB, In_p, Out_p,
                          out_dtype, single_buffer_residents=True))
    except Exception:
        # pipeline_mode on top-level BlockSpecs not supported by this jax version -> default buffering.
        out_padded = _pallas_apply(xp, params["w_fused"], params["pvec"], TB, In_p, Out_p,
                                   out_dtype, single_buffer_residents=False)

    return out_padded[:B, :Out]


def residual_block(x, w_fc, b_fc, w_ad, b_ad, gamma, beta, running_mean, running_var,
                   *, block_b=512, out_dtype=jnp.float32):
    """Convenience one-shot wrapper (prefer prepare_... + ..._apply for repeated inference)."""
    params = prepare_residual_block_params(w_fc, b_fc, w_ad, b_ad, gamma, beta,
                                           running_mean, running_var)
    return residual_block_apply(params, x, block_b=block_b, out_dtype=out_dtype)


def residual_block_ref(x, w_fc, b_fc, w_ad, b_ad, gamma, beta, running_mean, running_var):
    h = jnp.maximum(x @ w_fc + b_fc, 0.0)
    h = (h - running_mean) / jnp.sqrt(running_var + BN_EPS) * gamma + beta
    return h + (x @ w_ad + b_ad)


if __name__ == "__main__":
    key = jax.random.PRNGKey(0)
    IN_F, OUT_F = 32, 32

    kx, kwf, kbf, kwa, kba, kg, kb2, km, kv = jax.random.split(key, 9)

    # PyTorch-style uniform init, weights stored (In, Out) [pre-transposed].
    bound = 1.0 / float(np.sqrt(IN_F))
    w_fc = jax.random.uniform(kwf, (IN_F, OUT_F), jnp.float32, -bound, bound)
    b_fc = jax.random.uniform(kbf, (OUT_F,), jnp.float32, -bound, bound)
    w_ad = jax.random.uniform(kwa, (IN_F, OUT_F), jnp.float32, -bound, bound)
    b_ad = jax.random.uniform(kba, (OUT_F,), jnp.float32, -bound, bound)

    # Non-trivial BatchNorm params / running stats (exercise the BN fold).
    gamma = jax.random.uniform(kg, (OUT_F,), jnp.float32, 0.5, 1.5)
    beta = 0.1 * jax.random.normal(kb2, (OUT_F,), jnp.float32)
    running_mean = 0.1 * jax.random.normal(km, (OUT_F,), jnp.float32)
    running_var = jax.random.uniform(kv, (OUT_F,), jnp.float32, 0.5, 1.5)

    # One-time weight preparation (hoisted out of the per-call path).
    params = prepare_residual_block_params(w_fc, b_fc, w_ad, b_ad, gamma, beta,
                                           running_mean, running_var)

    for B in (8, 64):   # single-tile grid, and a 2-step "parallel" grid (v7x megacore path)
        x = jax.random.normal(jax.random.fold_in(kx, B), (B, IN_F), dtype=jnp.float32)
        out = jax.block_until_ready(residual_block_apply(params, x))
        ref = residual_block_ref(x, w_fc, b_fc, w_ad, b_ad, gamma, beta,
                                 running_mean, running_var)
        assert out.shape == (B, OUT_F)
        # bf16 matmul operands (f32 accumulate) -> allow ~1e-2-scale deviation vs pure-f32 ref.
        assert jnp.allclose(out, ref, atol=5e-2, rtol=5e-2), f"Pallas kernel mismatch at B={B}"

    print("KERNEL_OK")
</pallas_src>

<mosaic_0001>
module attributes {stable_mosaic.version = 11 : i64} {
  func.func @residual_block_kernel(%arg0: i32, %arg1: memref<8x128xbf16, #tpu.memory_space<vmem>>, %arg2: memref<128x256xbf16, #tpu.memory_space<vmem>>, %arg3: memref<8x128xf32, #tpu.memory_space<vmem>>, %arg4: memref<8x128xf32, #tpu.memory_space<vmem>>) attributes {dimension_semantics = [#tpu.dimension_semantics<parallel>], iteration_bounds = array<i64: 1>, scalar_prefetch = 0 : i64, scratch_operands = 0 : i64, tpu.core_type = #tpu.core_type<tc>, window_params = [{transform_indices = @transform_0, window_bounds = array<i64: 8, 128>}, {pipeline_mode = #tpu.pipeline_mode<synchronous>, transform_indices = @transform_1, window_bounds = array<i64: 128, 256>}, {pipeline_mode = #tpu.pipeline_mode<synchronous>, transform_indices = @transform_2, window_bounds = array<i64: 8, 128>}, {transform_indices = @transform_3, window_bounds = array<i64: 8, 128>}]} {
    %c0 = arith.constant 0 : index
    %c0_0 = arith.constant 0 : index
    %0 = vector.load %arg1[%c0, %c0_0] : memref<8x128xbf16, #tpu.memory_space<vmem>>, vector<8x128xbf16>
    %c0_1 = arith.constant 0 : index
    %c0_2 = arith.constant 0 : index
    %1 = vector.load %arg2[%c0_1, %c0_2] : memref<128x256xbf16, #tpu.memory_space<vmem>>, vector<128x128xbf16>
    %cst = arith.constant dense<0.000000e+00> : vector<8x128xf32>
    %2 = tpu.matmul %0, %1, %cst {dimension_numbers = #tpu.dot_dimension_numbers<[1], [0], [0], [1], [0, 0, 1, 1], [], []>} : vector<8x128xbf16>, vector<128x128xbf16>, vector<8x128xf32> -> vector<8x128xf32>
    %c0_3 = arith.constant 0 : index
    %c128 = arith.constant 128 : index
    %3 = vector.load %arg2[%c0_3, %c128] : memref<128x256xbf16, #tpu.memory_space<vmem>>, vector<128x128xbf16>
    %cst_4 = arith.constant dense<0.000000e+00> : vector<8x128xf32>
    %4 = tpu.matmul %0, %3, %cst_4 {dimension_numbers = #tpu.dot_dimension_numbers<[1], [0], [0], [1], [0, 0, 1, 1], [], []>} : vector<8x128xbf16>, vector<128x128xbf16>, vector<8x128xf32> -> vector<8x128xf32>
    %c0_5 = arith.constant 0 : index
    %c0_6 = arith.constant 0 : index
    %5 = vector.load %arg3[%c0_5, %c0_6] : memref<8x128xf32, #tpu.memory_space<vmem>>, vector<1x128xf32>
    %c1 = arith.constant 1 : index
    %c0_7 = arith.constant 0 : index
    %6 = vector.load %arg3[%c1, %c0_7] : memref<8x128xf32, #tpu.memory_space<vmem>>, vector<1x128xf32>
    %c2 = arith.constant 2 : index
    %c0_8 = arith.constant 0 : index
    %7 = vector.load %arg3[%c2, %c0_8] : memref<8x128xf32, #tpu.memory_space<vmem>>, vector<1x128xf32>
    %8 = vector.broadcast %5 : vector<1x128xf32> to vector<8x128xf32>
    %9 = arith.addf %2, %8 : vector<8x128xf32>
    %cst_9 = arith.constant 0.000000e+00 : f32
    %10 = vector.broadcast %cst_9 : f32 to vector<8x128xf32>
    %11 = arith.maximumf %9, %10 : vector<8x128xf32>
    %12 = vector.broadcast %6 : vector<1x128xf32> to vector<8x128xf32>
    %13 = arith.mulf %11, %12 : vector<8x128xf32>
    %14 = vector.broadcast %7 : vector<1x128xf32> to vector<8x128xf32>
    %15 = arith.addf %13, %14 : vector<8x128xf32>
    %16 = arith.addf %15, %4 : vector<8x128xf32>
    %c0_10 = arith.constant 0 : index
    %c0_11 = arith.constant 0 : index
    %17 = vector.load %arg4[%c0_10, %c0_11] : memref<8x128xf32, #tpu.memory_space<vmem>>, vector<8x128xf32>
    tpu.vector_store %arg4[%c0_10, %c0_11], %16 {strides = array<i32>} : memref<8x128xf32, #tpu.memory_space<vmem>>, vector<8x128xf32>,
    return
  }
  func.func @transform_0(%arg0: i32) -> (i32, i32) {
    %c0_i32 = arith.constant 0 : i32
    %c0_i32_0 = arith.constant 0 : i32
    return %arg0, %c0_i32 : i32, i32
  }
  func.func @transform_1(%arg0: i32) -> (i32, i32) {
    %c0_i32 = arith.constant 0 : i32
    %c0_i32_0 = arith.constant 0 : i32
    %c0_i32_1 = arith.constant 0 : i32
    return %c0_i32, %c0_i32_0 : i32, i32
  }
  func.func @transform_2(%arg0: i32) -> (i32, i32) {
    %c0_i32 = arith.constant 0 : i32
    %c0_i32_0 = arith.constant 0 : i32
    %c0_i32_1 = arith.constant 0 : i32
    return %c0_i32, %c0_i32_0 : i32, i32
  }
  func.func @transform_3(%arg0: i32) -> (i32, i32) {
    %c0_i32 = arith.constant 0 : i32
    %c0_i32_0 = arith.constant 0 : i32
    return %arg0, %c0_i32 : i32, i32
  }
}

module attributes {stable_mosaic.version = 11 : i64} {
  func.func @residual_block_kernel(%arg0: i32, %arg1: memref<8x128xbf16, #tpu.memory_space<vmem>>, %arg2: memref<128x256xbf16, #tpu.memory_space<vmem>>, %arg3: memref<8x128xf32, #tpu.memory_space<vmem>>, %arg4: memref<8x128xf32, #tpu.memory_space<vmem>>) attributes {dimension_semantics = [#tpu.dimension_semantics<parallel>], iteration_bounds = array<i64: 1>, scalar_prefetch = 0 : i64, scratch_operands = 0 : i64, tpu.core_type = #tpu.core_type<tc>, window_params = [{transform_indices = @transform_0, window_bounds = array<i64: 8, 128>}, {pipeline_mode = #tpu.pipeline_mode<synchronous>, transform_indices = @transform_1, window_bounds = array<i64: 128, 256>}, {pipeline_mode = #tpu.pipeline_mode<synchronous>, transform_indices = @transform_2, window_bounds = array<i64: 8, 128>}, {transform_indices = @transform_3, window_bounds = array<i64: 8, 128>}]} {
    %c0 = arith.constant 0 : index
    %c0_0 = arith.constant 0 : index
    %0 = vector.load %arg1[%c0, %c0_0] : memref<8x128xbf16, #tpu.memory_space<vmem>>, vector<8x128xbf16>
    %c0_1 = arith.constant 0 : index
    %c0_2 = arith.constant 0 : index
    %1 = vector.load %arg2[%c0_1, %c0_2] : memref<128x256xbf16, #tpu.memory_space<vmem>>, vector<128x128xbf16>
    %cst = arith.constant dense<0.000000e+00> : vector<8x128xf32>
    %2 = tpu.matmul %0, %1, %cst {dimension_numbers = #tpu.dot_dimension_numbers<[1], [0], [0], [1], [0, 0, 1, 1], [], []>} : vector<8x128xbf16>, vector<128x128xbf16>, vector<8x128xf32> -> vector<8x128xf32>
    %c0_3 = arith.constant 0 : index
    %c128 = arith.constant 128 : index
    %3 = vector.load %arg2[%c0_3, %c128] : memref<128x256xbf16, #tpu.memory_space<vmem>>, vector<128x128xbf16>
    %cst_4 = arith.constant dense<0.000000e+00> : vector<8x128xf32>
    %4 = tpu.matmul %0, %3, %cst_4 {dimension_numbers = #tpu.dot_dimension_numbers<[1], [0], [0], [1], [0, 0, 1, 1], [], []>} : vector<8x128xbf16>, vector<128x128xbf16>, vector<8x128xf32> -> vector<8x128xf32>
    %c0_5 = arith.constant 0 : index
    %c0_6 = arith.constant 0 : index
    %5 = vector.load %arg3[%c0_5, %c0_6] : memref<8x128xf32, #tpu.memory_space<vmem>>, vector<1x128xf32>
    %c1 = arith.constant 1 : index
    %c0_7 = arith.constant 0 : index
    %6 = vector.load %arg3[%c1, %c0_7] : memref<8x128xf32, #tpu.memory_space<vmem>>, vector<1x128xf32>
    %c2 = arith.constant 2 : index
    %c0_8 = arith.constant 0 : index
    %7 = vector.load %arg3[%c2, %c0_8] : memref<8x128xf32, #tpu.memory_space<vmem>>, vector<1x128xf32>
    %8 = vector.broadcast %5 : vector<1x128xf32> to vector<8x128xf32>
    %9 = arith.addf %2, %8 : vector<8x128xf32>
    %cst_9 = arith.constant 0.000000e+00 : f32
    %10 = vector.broadcast %cst_9 : f32 to vector<8x128xf32>
    %11 = arith.maximumf %9, %10 : vector<8x128xf32>
    %12 = vector.broadcast %6 : vector<1x128xf32> to vector<8x128xf32>
    %13 = arith.mulf %11, %12 : vector<8x128xf32>
    %14 = vector.broadcast %7 : vector<1x128xf32> to vector<8x128xf32>
    %15 = arith.addf %13, %14 : vector<8x128xf32>
    %16 = arith.addf %15, %4 : vector<8x128xf32>
    %c0_10 = arith.constant 0 : index
    %c0_11 = arith.constant 0 : index
    %17 = vector.load %arg4[%c0_10, %c0_11] : memref<8x128xf32, #tpu.memory_space<vmem>>, vector<8x128xf32>
    tpu.vector_store %arg4[%c0_10, %c0_11], %16 {strides = array<i32>} : memref<8x128xf32, #tpu.memory_space<vmem>>, vector<8x128xf32>,
    return
  }
  func.func @transform_0(%arg0: i32) -> (i32, i32) {
    %c0_i32 = arith.constant 0 : i32
    %c0_i32_0 = arith.constant 0 : i32
    return %arg0, %c0_i32 : i32, i32
  }
  func.func @transform_1(%arg0: i32) -> (i32, i32) {
    %c0_i32 = arith.constant 0 : i32
    %c0_i32_0 = arith.constant 0 : i32
    %c0_i32_1 = arith.constant 0 : i32
    return %c0_i32, %c0_i32_0 : i32, i32
  }
  func.func @transform_2(%arg0: i32) -> (i32, i32) {
    %c0_i32 = arith.constant 0 : i32
    %c0_i32_0 = arith.constant 0 : i32
    %c0_i32_1 = arith.constant 0 : i32
    return %c0_i32, %c0_i32_0 : i32, i32
  }
  func.func @transform_3(%arg0: i32) -> (i32, i32) {
    %c0_i32 = arith.constant 0 : i32
    %c0_i32_0 = arith.constant 0 : i32
    return %arg0, %c0_i32 : i32, i32
  }
}

</mosaic_0001>

<llo_original>
// kernel: tpu_custom_call.1
$region0: #{tpu_custom_call.1}
  #allocation0 [shape = 'u32[]', space=smem, size = 0x4, offset = 0x4, fixed_abs, tag = 'smem constant byte address 0x4 - core index']
  #allocation1 [shape = 'u32[144,128]{1,0:T(1,128)}', space=vmem, size = 0x12000, scoped, tag = 'internal scratch']
  %s0 = inlined_call_operand.hbm [shape: bf16[8,128], index: 0, kind: input, shape index: {}]
  %s1 = inlined_call_operand.hbm [shape: bf16[128,256], index: 1, kind: input, shape index: {}]
  %s2 = inlined_call_operand.hbm [shape: f32[8,128], index: 2, kind: input, shape index: {}]
  %s3 = inlined_call_operand.hbm [shape: f32[8,128], index: 3, kind: output, shape index: {}]
  %s4 = sld [smem:[#allocation0]]
  $region34: #{tpu_custom_call.1} parent=0
    _
  %s6 = ssub.s32 1, %s4
  %s7 = scalar_select 0, %s6, %s4
  $region1: #{tpu_custom_call.1} parent=0
    #allocation2 [shape = 'u8[2048]{0}', space=vmem, size = 0x800, scoped, tag = 'input window, operand 0, single buffered']
    #allocation3 [shape = 's32[1]{0}', space=sflag, size = 0x4, scoped, tag = 'scoped memory for tpu_custom_call.1']
    #allocation4 [shape = 's32[1]{0}', space=sflag, size = 0x4, scoped, tag = 'scoped memory for tpu_custom_call.1']
    #allocation5 [shape = 'u8[65536]{0}', space=vmem, size = 0x10000, scoped, tag = 'input window, operand 1, single buffered']
    #allocation6 [shape = 's32[1]{0}', space=sflag, size = 0x4, scoped, tag = 'scoped memory for tpu_custom_call.1']
    #allocation7 [shape = 'u8[4096]{0}', space=vmem, size = 0x1000, scoped, tag = 'input window, operand 2, single buffered']
    #allocation8 [shape = 'u8[4096]{0}', space=vmem, size = 0x1000, scoped, tag = 'output window, operand 0, single buffered']
    %8 = vsyncpa [#allocation3], 0
    %9 = vsyncpa [#allocation6], 0
    %10 = vsyncpa [#allocation4], 0
    // Predicated region
    $region2: #{tpu_custom_call.1} parent=1 // pred_check
      _
    $region3: #{tpu_custom_call.1} parent=1 // pred_check_branch
      %12 = sbr.rel (0) target = $region5
    $region4: #{tpu_custom_call.1} parent=1 // pred_region
      %s14 = ssub.s32 64, 64
      %15 = vsyncadd [#allocation3], %s14
      %s17 = sshll.u32 [#allocation2], 4
      %s18 = int_to_ptr.vmem [resolvable:$true] %s17
      %20 = dma.hbm_to_vmem [thread:$0]  %s0, 64, %s18, [#allocation3]
    $region5: #{tpu_custom_call.1} parent=1 // pred_fallthru
      _
    // Predicated region
    $region6: #{tpu_custom_call.1} parent=1 // pred_check
      _
    $region7: #{tpu_custom_call.1} parent=1 // pred_check_branch
      %22 = sbr.rel (0) target = $region9
    $region8: #{tpu_custom_call.1} parent=1 // pred_region
      %s24 = ssub.s32 2048, 2048
      %25 = vsyncadd [#allocation6], %s24
      %s26 = sshll.u32 [#allocation5], 4
      %s27 = int_to_ptr.vmem [resolvable:$true] %s26
      %32 = dma.hbm_to_vmem [thread:$0]  %s1, 2048, %s27, [#allocation6], 128, 128, 8
    $region9: #{tpu_custom_call.1} parent=1 // pred_fallthru
      _
    // Predicated region
    $region10: #{tpu_custom_call.1} parent=1 // pred_check
      _
    $region11: #{tpu_custom_call.1} parent=1 // pred_check_branch
      %34 = sbr.rel (0) target = $region13
    $region12: #{tpu_custom_call.1} parent=1 // pred_region
      %s36 = ssub.s32 128, 128
      %37 = vsyncadd [#allocation6], %s36
      %s39 = sshll.u32 [#allocation7], 4
      %s40 = int_to_ptr.vmem [resolvable:$true] %s39
      %42 = dma.hbm_to_vmem [thread:$0]  %s2, 128, %s40, [#allocation6]
    $region13: #{tpu_custom_call.1} parent=1 // pred_fallthru
      _
    // Predicated region
    $region14: #{tpu_custom_call.1} parent=1 // pred_check
      _
    $region15: #{tpu_custom_call.1} parent=1 // pred_check_branch
      %44 = sbr.rel (0) target = $region17
    $region16: #{tpu_custom_call.1} parent=1 // pred_region
      %45 = dma.done [#allocation3], 64
    $region17: #{tpu_custom_call.1} parent=1 // pred_fallthru
      _
    // Predicated region
    $region18: #{tpu_custom_call.1} parent=1 // pred_check
      _
    $region19: #{tpu_custom_call.1} parent=1 // pred_check_branch
      %47 = sbr.rel (0) target = $region21
    $region20: #{tpu_custom_call.1} parent=1 // pred_region
      %48 = dma.done [#allocation6], 2048
    $region21: #{tpu_custom_call.1} parent=1 // pred_fallthru
      _
    // Predicated region
    $region22: #{tpu_custom_call.1} parent=1 // pred_check
      _
    $region23: #{tpu_custom_call.1} parent=1 // pred_check_branch
      %50 = sbr.rel (0) target = $region25
    $region24: #{tpu_custom_call.1} parent=1 // pred_region
      %51 = dma.done [#allocation6], 128
    $region25: #{tpu_custom_call.1} parent=1 // pred_fallthru
      _
    %v53 = vld [vmem:[#allocation2] sm:$0xf]
    %v54 = vld [vmem:[#allocation5] sm:$0xf]
    %v55 = vld [vmem:[#allocation5 + $0x8] sm:$0xf]
    %v56 = vld [vmem:[#allocation5 + $0x10] sm:$0xf]
    %v57 = vld [vmem:[#allocation5 + $0x18] sm:$0xf]
    %v58 = vld [vmem:[#allocation5 + $0x20] sm:$0xf]
    %v59 = vld [vmem:[#allocation5 + $0x28] sm:$0xf]
    %v60 = vld [vmem:[#allocation5 + $0x30] sm:$0xf]
    %v61 = vld [vmem:[#allocation5 + $0x38] sm:$0xf]
    %v62 = vld [vmem:[#allocation5 + $0x40] sm:$0xf]
    %v63 = vld [vmem:[#allocation5 + $0x48] sm:$0xf]
    %v64 = vld [vmem:[#allocation5 + $0x50] sm:$0xf]
    %v65 = vld [vmem:[#allocation5 + $0x58] sm:$0xf]
    %v66 = vld [vmem:[#allocation5 + $0x60] sm:$0xf]
    %v67 = vld [vmem:[#allocation5 + $0x68] sm:$0xf]
    %v68 = vld [vmem:[#allocation5 + $0x70] sm:$0xf]
    %v69 = vld [vmem:[#allocation5 + $0x78] sm:$0xf]
    %v70 = vld [vmem:[#allocation5 + $0x4] sm:$0xf]
    %v71 = vld [vmem:[#allocation5 + $0xc] sm:$0xf]
    %v72 = vld [vmem:[#allocation5 + $0x14] sm:$0xf]
    %v73 = vld [vmem:[#allocation5 + $0x1c] sm:$0xf]
    %v74 = vld [vmem:[#allocation5 + $0x24] sm:$0xf]
    %v75 = vld [vmem:[#allocation5 + $0x2c] sm:$0xf]
    %v76 = vld [vmem:[#allocation5 + $0x34] sm:$0xf]
    %v77 = vld [vmem:[#allocation5 + $0x3c] sm:$0xf]
    %v78 = vld [vmem:[#allocation5 + $0x44] sm:$0xf]
    %v79 = vld [vmem:[#allocation5 + $0x4c] sm:$0xf]
    %v80 = vld [vmem:[#allocation5 + $0x54] sm:$0xf]
    %v81 = vld [vmem:[#allocation5 + $0x5c] sm:$0xf]
    %v82 = vld [vmem:[#allocation5 + $0x64] sm:$0xf]
    %v83 = vld [vmem:[#allocation5 + $0x6c] sm:$0xf]
    %v84 = vld [vmem:[#allocation5 + $0x74] sm:$0xf]
    %v85 = vld [vmem:[#allocation5 + $0x7c] sm:$0xf]
    %v102 = vunpack.c.l.b16 %v70
    %v103 = vunpack.c.l.b16 %v71
    %v104 = vunpack.c.l.b16 %v72
    %v105 = vunpack.c.l.b16 %v73
    %v106 = vunpack.c.l.b16 %v74
    %v107 = vunpack.c.l.b16 %v75
    %v108 = vunpack.c.l.b16 %v76
    %v109 = vunpack.c.l.b16 %v77
    %v110 = vunpack.c.l.b16 %v78
    %v111 = vunpack.c.l.b16 %v79
    %v112 = vunpack.c.l.b16 %v80
    %v113 = vunpack.c.l.b16 %v81
    %v114 = vunpack.c.l.b16 %v82
    %v115 = vunpack.c.l.b16 %v83
    %v116 = vunpack.c.l.b16 %v84
    %v117 = vunpack.c.l.b16 %v85
    %v118 = vpack.c.b16 %v103, %v102
    %v119 = vpack.c.b16 %v105, %v104
    %v120 = vpack.c.b16 %v107, %v106
    %v121 = vpack.c.b16 %v109, %v108
    %v122 = vpack.c.b16 %v111, %v110
    %v123 = vpack.c.b16 %v113, %v112
    %v124 = vpack.c.b16 %v115, %v114
    %v125 = vpack.c.b16 %v117, %v116
    %134 = vmatprep.subr.bf16.mxu0 0
    %135 = vmatpush1.bf16.msra.mxu0 %v118
    %136 = vmatprep.subr.bf16.mxu0 0
    %137 = vmatpush1.bf16.msra.mxu0 %v119
    %138 = vmatprep.subr.bf16.mxu0 0
    %139 = vmatpush1.bf16.msra.mxu0 %v120
    %140 = vmatprep.subr.bf16.mxu0 0
    %141 = vmatpush1.bf16.msra.mxu0 %v121
    %142 = vmatprep.subr.bf16.mxu0 0
    %143 = vmatpush1.bf16.msra.mxu0 %v122
    %144 = vmatprep.subr.bf16.mxu0 0
    %145 = vmatpush1.bf16.msra.mxu0 %v123
    %146 = vmatprep.subr.bf16.mxu0 0
    %147 = vmatpush1.bf16.msra.mxu0 %v124
    %148 = vmatprep.subr.bf16.mxu0 0
    %149 = vmatpush1.bf16.msra.mxu0 %v125
    %150 = vmatprep.subr.bf16.mxu0 0
    %151 = vmatpush1.bf16.msra.mxu0 0
    %152 = vmatprep.subr.bf16.mxu0 0
    %153 = vmatpush1.bf16.msra.mxu0 0
    %154 = vmatprep.subr.bf16.mxu0 0
    %155 = vmatpush1.bf16.msra.mxu0 0
    %156 = vmatprep.subr.bf16.mxu0 0
    %157 = vmatpush1.bf16.msra.mxu0 0
    %158 = vmatprep.subr.bf16.mxu0 0
    %159 = vmatpush1.bf16.msra.mxu0 0
    %160 = vmatprep.subr.bf16.mxu0 0
    %161 = vmatpush1.bf16.msra.mxu0 0
    %162 = vmatprep.subr.bf16.mxu0 0
    %163 = vmatpush1.bf16.msra.mxu0 0
    %164 = vmatprep.subr.bf16.mxu0 0
    %165 = vmatpush1.bf16.msra.mxu0 0
    %166 = vmatprep.mubr.bf16.mxu0 0
    %167 = vmatmul.mubr.bf16.gmra.mrb[0].mxu0 %v53
    %v168 = vpop.f32.mrb[0].mxu0
    %v169 = vadd.f32 0.0, %v168
    %v170 = vpop.f32.mrb[0].mxu0
    %v171 = vpop.f32.mrb[0].mxu0
    %v172 = vpop.f32.mrb[0].mxu0
    %173 = vdwg.mxu0
    %v174 = vld [vmem:[#allocation7] sm:$0x1]
    %v175 = vld [vmem:[#allocation7 + $0x1] sm:$0x1]
    %v176 = vld [vmem:[#allocation7 + $0x2] sm:$0x1]
    %v177 = vlaneseq
    %v178 = vshrl.u32 %v177, 7
    %v179 = vsub.s32 0, %v178
    %v180 = vrot.slane %v174, %v179
    %v197 = vunpack.c.l.b16 %v54
    %v198 = vunpack.c.l.b16 %v55
    %v199 = vunpack.c.l.b16 %v56
    %v200 = vunpack.c.l.b16 %v57
    %v201 = vunpack.c.l.b16 %v58
    %v202 = vunpack.c.l.b16 %v59
    %v203 = vunpack.c.l.b16 %v60
    %v204 = vunpack.c.l.b16 %v61
    %v205 = vunpack.c.l.b16 %v62
    %v206 = vunpack.c.l.b16 %v63
    %v207 = vunpack.c.l.b16 %v64
    %v208 = vunpack.c.l.b16 %v65
    %v209 = vunpack.c.l.b16 %v66
    %v210 = vunpack.c.l.b16 %v67
    %v211 = vunpack.c.l.b16 %v68
    %v212 = vunpack.c.l.b16 %v69
    %v213 = vpack.c.b16 %v198, %v197
    %v214 = vpack.c.b16 %v200, %v199
    %v215 = vpack.c.b16 %v202, %v201
    %v216 = vpack.c.b16 %v204, %v203
    %v217 = vpack.c.b16 %v206, %v205
    %v218 = vpack.c.b16 %v208, %v207
    %v219 = vpack.c.b16 %v210, %v209
    %v220 = vpack.c.b16 %v212, %v211
    %229 = vmatprep.subr.bf16.mxu0 0
    %230 = vmatpush1.bf16.msra.mxu0 %v213
    %231 = vmatprep.subr.bf16.mxu0 0
    %232 = vmatpush1.bf16.msra.mxu0 %v214
    %233 = vmatprep.subr.bf16.mxu0 0
    %234 = vmatpush1.bf16.msra.mxu0 %v215
    %235 = vmatprep.subr.bf16.mxu0 0
    %236 = vmatpush1.bf16.msra.mxu0 %v216
    %237 = vmatprep.subr.bf16.mxu0 0
    %238 = vmatpush1.bf16.msra.mxu0 %v217
    %239 = vmatprep.subr.bf16.mxu0 0
    %240 = vmatpush1.bf16.msra.mxu0 %v218
    %241 = vmatprep.subr.bf16.mxu0 0
    %242 = vmatpush1.bf16.msra.mxu0 %v219
    %243 = vmatprep.subr.bf16.mxu0 0
    %244 = vmatpush1.bf16.msra.mxu0 %v220
    %245 = vmatprep.subr.bf16.mxu0 0
    %246 = vmatpush1.bf16.msra.mxu0 0
    %247 = vmatprep.subr.bf16.mxu0 0
    %248 = vmatpush1.bf16.msra.mxu0 0
    %249 = vmatprep.subr.bf16.mxu0 0
    %250 = vmatpush1.bf16.msra.mxu0 0
    %251 = vmatprep.subr.bf16.mxu0 0
    %252 = vmatpush1.bf16.msra.mxu0 0
    %253 = vmatprep.subr.bf16.mxu0 0
    %254 = vmatpush1.bf16.msra.mxu0 0
    %255 = vmatprep.subr.bf16.mxu0 0
    %256 = vmatpush1.bf16.msra.mxu0 0
    %257 = vmatprep.subr.bf16.mxu0 0
    %258 = vmatpush1.bf16.msra.mxu0 0
    %259 = vmatprep.subr.bf16.mxu0 0
    %260 = vmatpush1.bf16.msra.mxu0 0
    %261 = vmatprep.mubr.bf16.mxu0 0
    %262 = vmatmul.mubr.bf16.gmra.mrb[0].mxu0 %v53
    %v263 = vpop.f32.mrb[0].mxu0
    %v264 = vadd.f32 %v180, %v263
    %v265 = vpop.f32.mrb[0].mxu0
    %v266 = vpop.f32.mrb[0].mxu0
    %v267 = vpop.f32.mrb[0].mxu0
    %268 = vdwg.mxu0
    %v269 = vmax.f32 %v264, 0.0
    %v270 = vlaneseq
    %v271 = vshrl.u32 %v270, 7
    %v272 = vsub.s32 0, %v271
    %v273 = vrot.slane %v175, %v272
    %v274 = vmul.f32 %v269, %v273
    %v275 = vlaneseq
    %v276 = vshrl.u32 %v275, 7
    %v277 = vsub.s32 0, %v276
    %v278 = vrot.slane %v176, %v277
    %v279 = vadd.f32 %v274, %v278
    %v280 = vadd.f32 %v279, %v169
    %281 = vst [vmem:[#allocation8] sm:$0xff] %v280
    // Predicated region
    $region26: #{tpu_custom_call.1} parent=1 // pred_check
      _
    $region27: #{tpu_custom_call.1} parent=1 // pred_check_branch
      %283 = sbr.rel (0) target = $region29
    $region28: #{tpu_custom_call.1} parent=1 // pred_region
      %s285 = ssub.s32 128, 128
      %286 = vsyncadd [#allocation4], %s285
      %s288 = sshll.u32 [#allocation8], 4
      %s289 = int_to_ptr.vmem [resolvable:$true] %s288
      %291 = dma.vmem_to_hbm [thread:$0]  %s289, 128, %s3, [#allocation4]
    $region29: #{tpu_custom_call.1} parent=1 // pred_fallthru
      _
    // Predicated region
    $region30: #{tpu_custom_call.1} parent=1 // pred_check
      _
    $region31: #{tpu_custom_call.1} parent=1 // pred_check_branch
      %293 = sbr.rel (0) target = $region33
    $region32: #{tpu_custom_call.1} parent=1 // pred_region
      %294 = dma.done [#allocation4], 128
    $region33: #{tpu_custom_call.1} parent=1 // pred_fallthru
      _
    %295 = vsyncpa [#allocation3], 1
    %296 = vsyncpa [#allocation6], 1
    %297 = vsyncpa [#allocation4], 1

// kernel: tpu_custom_call.1
$region0: #{tpu_custom_call.1}
  #allocation0 [shape = 'u32[]', space=smem, size = 0x4, offset = 0x4, fixed_abs, tag = 'smem constant byte address 0x4 - core index']
  #allocation1 [shape = 'u32[144,128]{1,0:T(1,128)}', space=vmem, size = 0x12000, scoped, tag = 'internal scratch']
  %s0 = inlined_call_operand.hbm [shape: bf16[8,128], index: 0, kind: input, shape index: {}]
  %s1 = inlined_call_operand.hbm [shape: bf16[128,256], index: 1, kind: input, shape index: {}]
  %s2 = inlined_call_operand.hbm [shape: f32[8,128], index: 2, kind: input, shape index: {}]
  %s3 = inlined_call_operand.hbm [shape: f32[8,128], index: 3, kind: output, shape index: {}]
  %s4 = sld [smem:[#allocation0]]
  $region34: #{tpu_custom_call.1} parent=0
    _
  %s6 = ssub.s32 1, %s4
  %s7 = scalar_select 0, %s6, %s4
  $region1: #{tpu_custom_call.1} parent=0
    #allocation2 [shape = 'u8[2048]{0}', space=vmem, size = 0x800, scoped, tag = 'input window, operand 0, single buffered']
    #allocation3 [shape = 's32[1]{0}', space=sflag, size = 0x4, scoped, tag = 'scoped memory for tpu_custom_call.1']
    #allocation4 [shape = 's32[1]{0}', space=sflag, size = 0x4, scoped, tag = 'scoped memory for tpu_custom_call.1']
    #allocation5 [shape = 'u8[65536]{0}', space=vmem, size = 0x10000, scoped, tag = 'input window, operand 1, single buffered']
    #allocation6 [shape = 's32[1]{0}', space=sflag, size = 0x4, scoped, tag = 'scoped memory for tpu_custom_call.1']
    #allocation7 [shape = 'u8[4096]{0}', space=vmem, size = 0x1000, scoped, tag = 'input window, operand 2, single buffered']
    #allocation8 [shape = 'u8[4096]{0}', space=vmem, size = 0x1000, scoped, tag = 'output window, operand 0, single buffered']
    %8 = vsyncpa [#allocation3], 0
    %9 = vsyncpa [#allocation6], 0
    %10 = vsyncpa [#allocation4], 0
    // Predicated region
    $region2: #{tpu_custom_call.1} parent=1 // pred_check
      _
    $region3: #{tpu_custom_call.1} parent=1 // pred_check_branch
      %12 = sbr.rel (0) target = $region5
    $region4: #{tpu_custom_call.1} parent=1 // pred_region
      %s14 = ssub.s32 64, 64
      %15 = vsyncadd [#allocation3], %s14
      %s17 = sshll.u32 [#allocation2], 4
      %s18 = int_to_ptr.vmem [resolvable:$true] %s17
      %20 = dma.hbm_to_vmem [thread:$0]  %s0, 64, %s18, [#allocation3]
    $region5: #{tpu_custom_call.1} parent=1 // pred_fallthru
      _
    // Predicated region
    $region6: #{tpu_custom_call.1} parent=1 // pred_check
      _
    $region7: #{tpu_custom_call.1} parent=1 // pred_check_branch
      %22 = sbr.rel (0) target = $region9
    $region8: #{tpu_custom_call.1} parent=1 // pred_region
      %s24 = ssub.s32 2048, 2048
      %25 = vsyncadd [#allocation6], %s24
      %s26 = sshll.u32 [#allocation5], 4
      %s27 = int_to_ptr.vmem [resolvable:$true] %s26
      %32 = dma.hbm_to_vmem [thread:$0]  %s1, 2048, %s27, [#allocation6], 128, 128, 8
    $region9: #{tpu_custom_call.1} parent=1 // pred_fallthru
      _
    // Predicated region
    $region10: #{tpu_custom_call.1} parent=1 // pred_check
      _
    $region11: #{tpu_custom_call.1} parent=1 // pred_check_branch
      %34 = sbr.rel (0) target = $region13
    $region12: #{tpu_custom_call.1} parent=1 // pred_region
      %s36 = ssub.s32 128, 128
      %37 = vsyncadd [#allocation6], %s36
      %s39 = sshll.u32 [#allocation7], 4
      %s40 = int_to_ptr.vmem [resolvable:$true] %s39
      %42 = dma.hbm_to_vmem [thread:$0]  %s2, 128, %s40, [#allocation6]
    $region13: #{tpu_custom_call.1} parent=1 // pred_fallthru
      _
    // Predicated region
    $region14: #{tpu_custom_call.1} parent=1 // pred_check
      _
    $region15: #{tpu_custom_call.1} parent=1 // pred_check_branch
      %44 = sbr.rel (0) target = $region17
    $region16: #{tpu_custom_call.1} parent=1 // pred_region
      %45 = dma.done [#allocation3], 64
    $region17: #{tpu_custom_call.1} parent=1 // pred_fallthru
      _
    // Predicated region
    $region18: #{tpu_custom_call.1} parent=1 // pred_check
      _
    $region19: #{tpu_custom_call.1} parent=1 // pred_check_branch
      %47 = sbr.rel (0) target = $region21
    $region20: #{tpu_custom_call.1} parent=1 // pred_region
      %48 = dma.done [#allocation6], 2048
    $region21: #{tpu_custom_call.1} parent=1 // pred_fallthru
      _
    // Predicated region
    $region22: #{tpu_custom_call.1} parent=1 // pred_check
      _
    $region23: #{tpu_custom_call.1} parent=1 // pred_check_branch
      %50 = sbr.rel (0) target = $region25
    $region24: #{tpu_custom_call.1} parent=1 // pred_region
      %51 = dma.done [#allocation6], 128
    $region25: #{tpu_custom_call.1} parent=1 // pred_fallthru
      _
    %v53 = vld [vmem:[#allocation2] sm:$0xf]
    %v54 = vld [vmem:[#allocation5] sm:$0xf]
    %v55 = vld [vmem:[#allocation5 + $0x8] sm:$0xf]
    %v56 = vld [vmem:[#allocation5 + $0x10] sm:$0xf]
    %v57 = vld [vmem:[#allocation5 + $0x18] sm:$0xf]
    %v58 = vld [vmem:[#allocation5 + $0x20] sm:$0xf]
    %v59 = vld [vmem:[#allocation5 + $0x28] sm:$0xf]
    %v60 = vld [vmem:[#allocation5 + $0x30] sm:$0xf]
    %v61 = vld [vmem:[#allocation5 + $0x38] sm:$0xf]
    %v62 = vld [vmem:[#allocation5 + $0x40] sm:$0xf]
    %v63 = vld [vmem:[#allocation5 + $0x48] sm:$0xf]
    %v64 = vld [vmem:[#allocation5 + $0x50] sm:$0xf]
    %v65 = vld [vmem:[#allocation5 + $0x58] sm:$0xf]
    %v66 = vld [vmem:[#allocation5 + $0x60] sm:$0xf]
    %v67 = vld [vmem:[#allocation5 + $0x68] sm:$0xf]
    %v68 = vld [vmem:[#allocation5 + $0x70] sm:$0xf]
    %v69 = vld [vmem:[#allocation5 + $0x78] sm:$0xf]
    %v70 = vld [vmem:[#allocation5 + $0x4] sm:$0xf]
    %v71 = vld [vmem:[#allocation5 + $0xc] sm:$0xf]
    %v72 = vld [vmem:[#allocation5 + $0x14] sm:$0xf]
    %v73 = vld [vmem:[#allocation5 + $0x1c] sm:$0xf]
    %v74 = vld [vmem:[#allocation5 + $0x24] sm:$0xf]
    %v75 = vld [vmem:[#allocation5 + $0x2c] sm:$0xf]
    %v76 = vld [vmem:[#allocation5 + $0x34] sm:$0xf]
    %v77 = vld [vmem:[#allocation5 + $0x3c] sm:$0xf]
    %v78 = vld [vmem:[#allocation5 + $0x44] sm:$0xf]
    %v79 = vld [vmem:[#allocation5 + $0x4c] sm:$0xf]
    %v80 = vld [vmem:[#allocation5 + $0x54] sm:$0xf]
    %v81 = vld [vmem:[#allocation5 + $0x5c] sm:$0xf]
    %v82 = vld [vmem:[#allocation5 + $0x64] sm:$0xf]
    %v83 = vld [vmem:[#allocation5 + $0x6c] sm:$0xf]
    %v84 = vld [vmem:[#allocation5 + $0x74] sm:$0xf]
    %v85 = vld [vmem:[#allocation5 + $0x7c] sm:$0xf]
    %v102 = vunpack.c.l.b16 %v70
    %v103 = vunpack.c.l.b16 %v71
    %v104 = vunpack.c.l.b16 %v72
    %v105 = vunpack.c.l.b16 %v73
    %v106 = vunpack.c.l.b16 %v74
    %v107 = vunpack.c.l.b16 %v75
    %v108 = vunpack.c.l.b16 %v76
    %v109 = vunpack.c.l.b16 %v77
    %v110 = vunpack.c.l.b16 %v78
    %v111 = vunpack.c.l.b16 %v79
    %v112 = vunpack.c.l.b16 %v80
    %v113 = vunpack.c.l.b16 %v81
    %v114 = vunpack.c.l.b16 %v82
    %v115 = vunpack.c.l.b16 %v83
    %v116 = vunpack.c.l.b16 %v84
    %v117 = vunpack.c.l.b16 %v85
    %v118 = vpack.c.b16 %v103, %v102
    %v119 = vpack.c.b16 %v105, %v104
    %v120 = vpack.c.b16 %v107, %v106
    %v121 = vpack.c.b16 %v109, %v108
    %v122 = vpack.c.b16 %v111, %v110
    %v123 = vpack.c.b16 %v113, %v112
    %v124 = vpack.c.b16 %v115, %v114
    %v125 = vpack.c.b16 %v117, %v116
    %134 = vmatprep.subr.bf16.mxu0 0
    %135 = vmatpush1.bf16.msra.mxu0 %v118
    %136 = vmatprep.subr.bf16.mxu0 0
    %137 = vmatpush1.bf16.msra.mxu0 %v119
    %138 = vmatprep.subr.bf16.mxu0 0
    %139 = vmatpush1.bf16.msra.mxu0 %v120
    %140 = vmatprep.subr.bf16.mxu0 0
    %141 = vmatpush1.bf16.msra.mxu0 %v121
    %142 = vmatprep.subr.bf16.mxu0 0
    %143 = vmatpush1.bf16.msra.mxu0 %v122
    %144 = vmatprep.subr.bf16.mxu0 0
    %145 = vmatpush1.bf16.msra.mxu0 %v123
    %146 = vmatprep.subr.bf16.mxu0 0
    %147 = vmatpush1.bf16.msra.mxu0 %v124
    %148 = vmatprep.subr.bf16.mxu0 0
    %149 = vmatpush1.bf16.msra.mxu0 %v125
    %150 = vmatprep.subr.bf16.mxu0 0
    %151 = vmatpush1.bf16.msra.mxu0 0
    %152 = vmatprep.subr.bf16.mxu0 0
    %153 = vmatpush1.bf16.msra.mxu0 0
    %154 = vmatprep.subr.bf16.mxu0 0
    %155 = vmatpush1.bf16.msra.mxu0 0
    %156 = vmatprep.subr.bf16.mxu0 0
    %157 = vmatpush1.bf16.msra.mxu0 0
    %158 = vmatprep.subr.bf16.mxu0 0
    %159 = vmatpush1.bf16.msra.mxu0 0
    %160 = vmatprep.subr.bf16.mxu0 0
    %161 = vmatpush1.bf16.msra.mxu0 0
    %162 = vmatprep.subr.bf16.mxu0 0
    %163 = vmatpush1.bf16.msra.mxu0 0
    %164 = vmatprep.subr.bf16.mxu0 0
    %165 = vmatpush1.bf16.msra.mxu0 0
    %166 = vmatprep.mubr.bf16.mxu0 0
    %167 = vmatmul.mubr.bf16.gmra.mrb[0].mxu0 %v53
    %v168 = vpop.f32.mrb[0].mxu0
    %v169 = vadd.f32 0.0, %v168
    %v170 = vpop.f32.mrb[0].mxu0
    %v171 = vpop.f32.mrb[0].mxu0
    %v172 = vpop.f32.mrb[0].mxu0
    %173 = vdwg.mxu0
    %v174 = vld [vmem:[#allocation7] sm:$0x1]
    %v175 = vld [vmem:[#allocation7 + $0x1] sm:$0x1]
    %v176 = vld [vmem:[#allocation7 + $0x2] sm:$0x1]
    %v177 = vlaneseq
    %v178 = vshrl.u32 %v177, 7
    %v179 = vsub.s32 0, %v178
    %v180 = vrot.slane %v174, %v179
    %v197 = vunpack.c.l.b16 %v54
    %v198 = vunpack.c.l.b16 %v55
    %v199 = vunpack.c.l.b16 %v56
    %v200 = vunpack.c.l.b16 %v57
    %v201 = vunpack.c.l.b16 %v58
    %v202 = vunpack.c.l.b16 %v59
    %v203 = vunpack.c.l.b16 %v60
    %v204 = vunpack.c.l.b16 %v61
    %v205 = vunpack.c.l.b16 %v62
    %v206 = vunpack.c.l.b16 %v63
    %v207 = vunpack.c.l.b16 %v64
    %v208 = vunpack.c.l.b16 %v65
    %v209 = vunpack.c.l.b16 %v66
    %v210 = vunpack.c.l.b16 %v67
    %v211 = vunpack.c.l.b16 %v68
    %v212 = vunpack.c.l.b16 %v69
    %v213 = vpack.c.b16 %v198, %v197
    %v214 = vpack.c.b16 %v200, %v199
    %v215 = vpack.c.b16 %v202, %v201
    %v216 = vpack.c.b16 %v204, %v203
    %v217 = vpack.c.b16 %v206, %v205
    %v218 = vpack.c.b16 %v208, %v207
    %v219 = vpack.c.b16 %v210, %v209
    %v220 = vpack.c.b16 %v212, %v211
    %229 = vmatprep.subr.bf16.mxu0 0
    %230 = vmatpush1.bf16.msra.mxu0 %v213
    %231 = vmatprep.subr.bf16.mxu0 0
    %232 = vmatpush1.bf16.msra.mxu0 %v214
    %233 = vmatprep.subr.bf16.mxu0 0
    %234 = vmatpush1.bf16.msra.mxu0 %v215
    %235 = vmatprep.subr.bf16.mxu0 0
    %236 = vmatpush1.bf16.msra.mxu0 %v216
    %237 = vmatprep.subr.bf16.mxu0 0
    %238 = vmatpush1.bf16.msra.mxu0 %v217
    %239 = vmatprep.subr.bf16.mxu0 0
    %240 = vmatpush1.bf16.msra.mxu0 %v218
    %241 = vmatprep.subr.bf16.mxu0 0
    %242 = vmatpush1.bf16.msra.mxu0 %v219
    %243 = vmatprep.subr.bf16.mxu0 0
    %244 = vmatpush1.bf16.msra.mxu0 %v220
    %245 = vmatprep.subr.bf16.mxu0 0
    %246 = vmatpush1.bf16.msra.mxu0 0
    %247 = vmatprep.subr.bf16.mxu0 0
    %248 = vmatpush1.bf16.msra.mxu0 0
    %249 = vmatprep.subr.bf16.mxu0 0
    %250 = vmatpush1.bf16.msra.mxu0 0
    %251 = vmatprep.subr.bf16.mxu0 0
    %252 = vmatpush1.bf16.msra.mxu0 0
    %253 = vmatprep.subr.bf16.mxu0 0
    %254 = vmatpush1.bf16.msra.mxu0 0
    %255 = vmatprep.subr.bf16.mxu0 0
    %256 = vmatpush1.bf16.msra.mxu0 0
    %257 = vmatprep.subr.bf16.mxu0 0
    %258 = vmatpush1.bf16.msra.mxu0 0
    %259 = vmatprep.subr.bf16.mxu0 0
    %260 = vmatpush1.bf16.msra.mxu0 0
    %261 = vmatprep.mubr.bf16.mxu0 0
    %262 = vmatmul.mubr.bf16.gmra.mrb[0].mxu0 %v53
    %v263 = vpop.f32.mrb[0].mxu0
    %v264 = vadd.f32 %v180, %v263
    %v265 = vpop.f32.mrb[0].mxu0
    %v266 = vpop.f32.mrb[0].mxu0
    %v267 = vpop.f32.mrb[0].mxu0
    %268 = vdwg.mxu0
    %v269 = vmax.f32 %v264, 0.0
    %v270 = vlaneseq
    %v271 = vshrl.u32 %v270, 7
    %v272 = vsub.s32 0, %v271
    %v273 = vrot.slane %v175, %v272
    %v274 = vmul.f32 %v269, %v273
    %v275 = vlaneseq
    %v276 = vshrl.u32 %v275, 7
    %v277 = vsub.s32 0, %v276
    %v278 = vrot.slane %v176, %v277
    %v279 = vadd.f32 %v274, %v278
    %v280 = vadd.f32 %v279, %v169
    %281 = vst [vmem:[#allocation8] sm:$0xff] %v280
    // Predicated region
    $region26: #{tpu_custom_call.1} parent=1 // pred_check
      _
    $region27: #{tpu_custom_call.1} parent=1 // pred_check_branch
      %283 = sbr.rel (0) target = $region29
    $region28: #{tpu_custom_call.1} parent=1 // pred_region
      %s285 = ssub.s32 128, 128
      %286 = vsyncadd [#allocation4], %s285
      %s288 = sshll.u32 [#allocation8], 4
      %s289 = int_to_ptr.vmem [resolvable:$true] %s288
      %291 = dma.vmem_to_hbm [thread:$0]  %s289, 128, %s3, [#allocation4]
    $region29: #{tpu_custom_call.1} parent=1 // pred_fallthru
      _
    // Predicated region
    $region30: #{tpu_custom_call.1} parent=1 // pred_check
      _
    $region31: #{tpu_custom_call.1} parent=1 // pred_check_branch
      %293 = sbr.rel (0) target = $region33
    $region32: #{tpu_custom_call.1} parent=1 // pred_region
      %294 = dma.done [#allocation4], 128
    $region33: #{tpu_custom_call.1} parent=1 // pred_fallthru
      _
    %295 = vsyncpa [#allocation3], 1
    %296 = vsyncpa [#allocation6], 1
    %297 = vsyncpa [#allocation4], 1

</llo_original>
